<compile_context>
chip_gen: v7x
topology: tpu7x:2x2x1
jax: 0.10.0
libtpu: 0.0.40
codegen_flags: <defaults>
</compile_context>

<pallas_src>
import functools

import jax
import jax.numpy as jnp
from jax.experimental import pallas as pl
from jax.experimental.pallas import tpu as pltpu


def _round_up(x, m):
    return ((x + m - 1) // m) * m


def _cdiv(a, b):
    return (a + b - 1) // b


def _critic_kernel(b_ref, x_ref, w_ref, o_ref, acc_ref, *, D, TD):
    # b_ref:   (1,)      f32 in SMEM (scalar prefetch)
    # x_ref:   (TB, TD)  batch-tile x feature-chunk of the state
    # w_ref:   (1, Dp)   full lane-dense f32 weight, resident across the grid
    # o_ref:   (TB, 1)   value estimates for this batch tile
    # acc_ref: (TB, 128) f32 per-lane partial sums, resident across feature axis
    k = pl.program_id(1)

    @pl.when(k == 0)
    def _():
        acc_ref[...] = jnp.zeros_like(acc_ref)

    x = x_ref[...].astype(jnp.float32)
    if D % TD != 0:
        # Mask tail lanes of the ragged last feature chunk (OOB lanes are
        # undefined and must not reach the accumulator).
        lane = jax.lax.broadcasted_iota(jnp.int32, x.shape, 1)
        x = jnp.where(k * TD + lane < D, x, 0.0)

    # Slice the k-th chunk of the resident weight (no per-step weight DMA).
    start = pl.multiple_of(k * TD, 128)
    w = w_ref[:, pl.ds(start, TD)]  # (1, TD) f32

    # VPU multiply + lane-aligned adds into per-lane partials (no per-step
    # cross-lane reduce; all same-lane-position vreg adds).
    p = x * w  # (TB, TD)
    acc = acc_ref[...]
    for c in range(TD // 128):
        acc = acc + p[:, c * 128:(c + 1) * 128]
    acc_ref[...] = acc

    @pl.when(k == pl.num_programs(1) - 1)
    def _():
        # Single 128 -> 1 cross-lane reduce per batch tile, plus bias.
        o_ref[...] = (jnp.sum(acc_ref[...], axis=-1, keepdims=True)
                      + b_ref[0]).astype(o_ref.dtype)


def critic_forward(state, weight, bias):
    """state: (B, D); weight: (1, D) (torch nn.Linear layout); bias: (1,)."""
    B, D = state.shape

    # Feature tiling: pick the chunk count first so weight padding is < 128
    # lanes; the state itself is never padded.
    D128 = _round_up(max(D, 1), 128)
    TD_MAX = 2048
    n_k = _cdiv(D128, TD_MAX)
    TD = _round_up(_cdiv(D128, n_k), 128)
    Dp = n_k * TD

    # Batch tiling: ~4 MiB per input buffer (double-buffered; fits v5e's
    # 16 MiB default scoped VMEM and v7x's 32 MiB).  Guarantee >= 2 batch
    # tiles when B > 8 so the "parallel" axis spans both v7x TensorCores.
    budget = 4 * 1024 * 1024
    itemsize = jnp.dtype(state.dtype).itemsize
    TB_max = max(8, min(1024, (budget // (TD * itemsize)) // 8 * 8))
    n_i = _cdiv(B, TB_max)
    if B > 8:
        n_i = max(n_i, 2)
    TB = _round_up(_cdiv(B, n_i), 8)
    if B < 8:
        TB = B  # block equals full batch dim (allowed); avoids any OOB rows
    n_i = _cdiv(B, TB)

    # Only the tiny weight is padded; it stays f32 (no lossy bf16 round-trip).
    w = weight.reshape(1, D).astype(jnp.float32)
    if Dp != D:
        w = jnp.pad(w, ((0, 0), (0, Dp - D)))
    b = bias.reshape(1).astype(jnp.float32)

    kernel = functools.partial(_critic_kernel, D=D, TD=TD)

    return pl.pallas_call(
        kernel,
        out_shape=jax.ShapeDtypeStruct((B, 1), state.dtype),
        grid_spec=pltpu.PrefetchScalarGridSpec(
            num_scalar_prefetch=1,          # bias -> SMEM
            grid=(n_i, n_k),                # (batch tiles, feature chunks)
            in_specs=[
                pl.BlockSpec((TB, TD), lambda i, k, b_sm: (i, k)),
                pl.BlockSpec((1, Dp), lambda i, k, b_sm: (0, 0)),  # resident
            ],
            out_specs=pl.BlockSpec((TB, 1), lambda i, k, b_sm: (i, 0)),
            scratch_shapes=[pltpu.VMEM((TB, 128), jnp.float32)],
        ),
        compiler_params=pltpu.CompilerParams(
            # batch axis shards across v7x's 2 TCs; feature axis is a reduction
            dimension_semantics=("parallel", "arbitrary"),
        ),
    )(b, state, w)


def init_critic_params(key, input_size):
    """Mimic torch.nn.Linear default init (uniform +-1/sqrt(fan_in))."""
    kw, kb = jax.random.split(key)
    bound = 1.0 / (input_size ** 0.5)
    weight = jax.random.uniform(kw, (1, input_size), jnp.float32, -bound, bound)
    bias = jax.random.uniform(kb, (1,), jnp.float32, -bound, bound)
    return weight, bias


if __name__ == "__main__":
    key = jax.random.PRNGKey(0)
    k_params, k_state, k_state2 = jax.random.split(key, 3)

    # Small shapes consistent with the module: batch=8, input_size=32.
    batch, input_size = 8, 32
    weight, bias = init_critic_params(k_params, input_size)
    state = jax.random.normal(k_state, (batch, input_size), jnp.float32)

    value_estimate = jax.block_until_ready(critic_forward(state, weight, bias))
    ref = state @ weight.T + bias
    assert value_estimate.shape == (batch, 1)
    assert jnp.allclose(value_estimate, ref, atol=1e-5, rtol=1e-5)

    # Second check: ragged batch tile (B=37) and masked feature tail (D=200),
    # exercising the unpadded-state path and the reduction grid axis.
    batch2, input2 = 37, 200
    weight2, bias2 = init_critic_params(k_params, input2)
    state2 = jax.random.normal(k_state2, (batch2, input2), jnp.float32)
    out2 = jax.block_until_ready(critic_forward(state2, weight2, bias2))
    ref2 = state2 @ weight2.T + bias2
    assert out2.shape == (batch2, 1)
    assert jnp.allclose(out2, ref2, atol=1e-4, rtol=1e-4)

    print("KERNEL_OK")
</pallas_src>

<mosaic_0001>
module attributes {stable_mosaic.version = 11 : i64} {
  func.func @_critic_kernel(%arg0: i32, %arg1: i32, %arg2: memref<1xf32, #tpu.memory_space<smem>>, %arg3: memref<8x128xf32, #tpu.memory_space<vmem>>, %arg4: memref<1x128xf32, #tpu.memory_space<vmem>>, %arg5: memref<8x1xf32, #tpu.memory_space<vmem>>, %arg6: memref<8x128xf32, #tpu.memory_space<vmem>>) attributes {dimension_semantics = [#tpu.dimension_semantics<parallel>, #tpu.dimension_semantics<arbitrary>], iteration_bounds = array<i64: 1, 1>, scalar_prefetch = 1 : i64, scratch_operands = 1 : i64, tpu.core_type = #tpu.core_type<tc>, window_params = [{transform_indices = @transform_0, window_bounds = array<i64: 8, 128>}, {pipeline_mode = #tpu.pipeline_mode<synchronous>, transform_indices = @transform_1, window_bounds = array<i64: 1, 128>}, {transform_indices = @transform_2, window_bounds = array<i64: 8, 1>}]} {
    %c0_i32 = arith.constant 0 : i32
    %0 = arith.cmpi eq, %arg1, %c0_i32 : i32
    %1 = arith.extui %0 : i1 to i32
    %c0_i32_0 = arith.constant 0 : i32
    %2 = arith.cmpi ne, %1, %c0_i32_0 : i32
    scf.if %2 {
      %cst_10 = arith.constant 0.000000e+00 : f32
      %24 = vector.broadcast %cst_10 : f32 to vector<8x128xf32>
      %c0_11 = arith.constant 0 : index
      %c0_12 = arith.constant 0 : index
      %25 = vector.load %arg6[%c0_11, %c0_12] : memref<8x128xf32, #tpu.memory_space<vmem>>, vector<8x128xf32>
      tpu.vector_store %arg6[%c0_11, %c0_12], %24 {strides = array<i32>} : memref<8x128xf32, #tpu.memory_space<vmem>>, vector<8x128xf32>,
    } else {
    }
    %c0 = arith.constant 0 : index
    %c0_1 = arith.constant 0 : index
    %3 = vector.load %arg3[%c0, %c0_1] : memref<8x128xf32, #tpu.memory_space<vmem>>, vector<8x128xf32>
    %4 = tpu.iota {dimensions = array<i32: 1>} : vector<8x128xi32>
    %c128_i32 = arith.constant 128 : i32
    %5 = arith.muli %arg1, %c128_i32 : i32
    %6 = vector.broadcast %5 : i32 to vector<8x128xi32>
    %7 = arith.addi %6, %4 : vector<8x128xi32>
    %c32_i32 = arith.constant 32 : i32
    %8 = vector.broadcast %c32_i32 : i32 to vector<8x128xi32>
    %9 = arith.cmpi slt, %7, %8 : vector<8x128xi32>
    %cst = arith.constant 0.000000e+00 : f32
    %10 = vector.broadcast %cst : f32 to vector<8x128xf32>
    %11 = arith.select %9, %3, %10 : vector<8x128xi1>, vector<8x128xf32>
    %c128_i32_2 = arith.constant 128 : i32
    %12 = arith.muli %arg1, %c128_i32_2 : i32
    %13 = tpu.assume_multiple %12, 128 : i32
    %c0_3 = arith.constant 0 : index
    %14 = arith.index_cast %13 : i32 to index
    %15 = vector.load %arg4[%c0_3, %14] : memref<1x128xf32, #tpu.memory_space<vmem>>, vector<1x128xf32>
    %16 = vector.broadcast %15 : vector<1x128xf32> to vector<8x128xf32>
    %17 = arith.mulf %11, %16 : vector<8x128xf32>
    %c0_4 = arith.constant 0 : index
    %c0_5 = arith.constant 0 : index
    %18 = vector.load %arg6[%c0_4, %c0_5] : memref<8x128xf32, #tpu.memory_space<vmem>>, vector<8x128xf32>
    %19 = arith.addf %18, %17 : vector<8x128xf32>
    %c0_6 = arith.constant 0 : index
    %c0_7 = arith.constant 0 : index
    %20 = vector.load %arg6[%c0_6, %c0_7] : memref<8x128xf32, #tpu.memory_space<vmem>>, vector<8x128xf32>
    tpu.vector_store %arg6[%c0_6, %c0_7], %19 {strides = array<i32>} : memref<8x128xf32, #tpu.memory_space<vmem>>, vector<8x128xf32>,
    %c0_i32_8 = arith.constant 0 : i32
    %21 = arith.cmpi eq, %arg1, %c0_i32_8 : i32
    %22 = arith.extui %21 : i1 to i32
    %c0_i32_9 = arith.constant 0 : i32
    %23 = arith.cmpi ne, %22, %c0_i32_9 : i32
    scf.if %23 {
      %c0_10 = arith.constant 0 : index
      %c0_11 = arith.constant 0 : index
      %24 = vector.load %arg6[%c0_10, %c0_11] : memref<8x128xf32, #tpu.memory_space<vmem>>, vector<8x128xf32>
      %cst_12 = arith.constant dense<0.000000e+00> : vector<8xf32>
      %25 = vector.multi_reduction <add>, %24, %cst_12 [1] : vector<8x128xf32> to vector<8xf32>
      %26 = vector.shape_cast %25 : vector<8xf32> to vector<8x1xf32>
      %c0_13 = arith.constant 0 : index
      %27 = memref.load %arg2[%c0_13] : memref<1xf32, #tpu.memory_space<smem>>
      %28 = vector.broadcast %27 : f32 to vector<8x1xf32>
      %29 = arith.addf %26, %28 : vector<8x1xf32>
      %c0_14 = arith.constant 0 : index
      %c0_15 = arith.constant 0 : index
      %30 = vector.load %arg5[%c0_14, %c0_15] : memref<8x1xf32, #tpu.memory_space<vmem>>, vector<8x1xf32>
      tpu.vector_store %arg5[%c0_14, %c0_15], %29 {strides = array<i32>} : memref<8x1xf32, #tpu.memory_space<vmem>>, vector<8x1xf32>,
    } else {
    }
    return
  }
  func.func @transform_0(%arg0: i32, %arg1: i32, %arg2: memref<1xf32, #tpu.memory_space<smem>>) -> (i32, i32) {
    %c0_i32 = arith.constant 0 : i32
    return %arg0, %arg1 : i32, i32
  }
  func.func @transform_1(%arg0: i32, %arg1: i32, %arg2: memref<1xf32, #tpu.memory_space<smem>>) -> (i32, i32) {
    %c0_i32 = arith.constant 0 : i32
    %c0_i32_0 = arith.constant 0 : i32
    %c0_i32_1 = arith.constant 0 : i32
    return %c0_i32, %c0_i32_0 : i32, i32
  }
  func.func @transform_2(%arg0: i32, %arg1: i32, %arg2: memref<1xf32, #tpu.memory_space<smem>>) -> (i32, i32) {
    %c0_i32 = arith.constant 0 : i32
    %c0_i32_0 = arith.constant 0 : i32
    return %arg0, %c0_i32 : i32, i32
  }
}

</mosaic_0001>

<llo_original>
// kernel: tpu_custom_call.1
$region0: #{tpu_custom_call.1}
  #allocation0 [shape = 'u32[]', space=smem, size = 0x4, offset = 0x4, fixed_abs, tag = 'smem constant byte address 0x4 - core index']
  #allocation1 [shape = 'u32[144,128]{1,0:T(1,128)}', space=vmem, size = 0x12000, scoped, tag = 'internal scratch']
  #allocation2 [shape = 'f32[8,128]{1,0:T(8,128)}', space=vmem, size = 0x1000, scoped, tag = 'scratch operand']
  #allocation3 [shape = 's32[1]{0}', space=sflag, size = 0x4, scoped, tag = 'scoped memory for tpu_custom_call.1']
  #allocation4 [shape = 'f32[1]{0:T(128)S(6)}', space=smem, size = 0x200, scoped, tag = 'prefetched SMEM operand 0']
  %s0 = inlined_call_operand.<no memory space> [shape: f32[1], index: 0, kind: input, shape index: {}]
  %s1 = inlined_call_operand.hbm [shape: f32[8,32], index: 1, kind: input, shape index: {}]
  %s2 = inlined_call_operand.vmem [shape: f32[1,128], index: 2, kind: input, shape index: {}]
  %s3 = inlined_call_operand.vmem [shape: f32[8,1], index: 3, kind: output, shape index: {}]
  %s4 = sld [smem:[#allocation0]]
  $region30: #{tpu_custom_call.1} parent=0
    _
  %s6 = ssub.s32 1, %s4
  %s7 = scalar_select 0, %s6, %s4
  %8 = sst [smem:[#allocation4]] %s0
  $region1: #{tpu_custom_call.1} parent=0
    #allocation5 [shape = 'u8[4096]{0}', space=vmem, size = 0x1000, scoped, tag = 'input window, operand 1, single buffered']
    #allocation6 [shape = 's32[1]{0}', space=sflag, size = 0x4, scoped, tag = 'scoped memory for tpu_custom_call.1']
    %9 = vsyncpa [#allocation6], 0
    // Predicated region
    $region2: #{tpu_custom_call.1} parent=1 // pred_check
      _
    $region3: #{tpu_custom_call.1} parent=1 // pred_check_branch
      %11 = sbr.rel (0) target = $region5
    $region4: #{tpu_custom_call.1} parent=1 // pred_region
      %s13 = ssub.s32 128, 128
      %14 = vsyncadd [#allocation6], %s13
      %s16 = sshll.u32 [#allocation5], 4
      %s17 = int_to_ptr.vmem [resolvable:$true] %s16
      %19 = dma.hbm_to_vmem [thread:$0]  %s1, 128, %s17, [#allocation6]
    $region5: #{tpu_custom_call.1} parent=1 // pred_fallthru
      _
    // Predicated region
    $region6: #{tpu_custom_call.1} parent=1 // pred_check
      _
    $region7: #{tpu_custom_call.1} parent=1 // pred_check_branch
      %21 = sbr.rel (0) target = $region9
    $region8: #{tpu_custom_call.1} parent=1 // pred_region
      _
    $region9: #{tpu_custom_call.1} parent=1 // pred_fallthru
      _
    // Predicated region
    $region10: #{tpu_custom_call.1} parent=1 // pred_check
      _
    $region11: #{tpu_custom_call.1} parent=1 // pred_check_branch
      %23 = sbr.rel (0) target = $region13
    $region12: #{tpu_custom_call.1} parent=1 // pred_region
      %24 = dma.done [#allocation6], 128
    $region13: #{tpu_custom_call.1} parent=1 // pred_fallthru
      _
    %p25 = scmp.eq.s32.totalorder 0, 0
    // Predicated region
    $region14: #{tpu_custom_call.1} parent=1 // pred_check
      %p26 = pneg %p25
    $region15: #{tpu_custom_call.1} parent=1 // pred_check_branch
      %28 = sbr.rel (%p26) target = $region17
    $region16: #{tpu_custom_call.1} parent=1 // pred_region
      %29 = vst [vmem:[#allocation2] sm:$0xff] 0.0
    $region17: #{tpu_custom_call.1} parent=1 // pred_fallthru
      _
    %v30 = vld [vmem:[#allocation5] sm:$0xff]
    %v31 = vlaneseq
    %v32 = vand.u32 %v31, 127
    %s33 = smul.u32 0, 128
    %v34 = vstv %s33
    %v35 = vadd.s32 %v34, %v32
    %vm36 = vcmp.lt.s32.totalorder %v35, 32
    %v37 = vsel %vm36, %v30, 0.0
    %s38 = sshra.s32 %s33, 7
    %s39 = sand.u32 %s33, 127
    %s40 = scalar_lea.vmem %s2, %s38
    %v41 = vld [vmem:[%s40] sm:$0x1]
    %v43 = vlaneseq
    %v44 = vshrl.u32 %v43, 7
    %v45 = vsub.s32 0, %v44
    %v46 = vrot.slane %v41, %v45
    %v48 = vmul.f32 %v37, %v46
    %v49 = vld [vmem:[#allocation2] sm:$0xff]
    %v50 = vadd.f32 %v49, %v48
    %51 = vst [vmem:[#allocation2] sm:$0xff] %v50
    // Predicated region
    $region18: #{tpu_custom_call.1} parent=1 // pred_check
      %p52 = pneg %p25
    $region19: #{tpu_custom_call.1} parent=1 // pred_check_branch
      %54 = sbr.rel (%p52) target = $region21
    $region20: #{tpu_custom_call.1} parent=1 // pred_region
      %v55 = vld [vmem:[#allocation2] sm:$0xff]
      %56 = vadd.xlane.f32.xlu0 %v55
      %v57 = vpop.xlane.xlu0 %56
      %s58 = sld [smem:[#allocation4]]
      %v59 = vstv %s58
      %v60 = vadd.f32 %v57, %v59
      %vm61 = vcmask 7168
      %62 = vst.msk [vmem:[%s3] sm:$0xff] %vm61, %v60
    $region21: #{tpu_custom_call.1} parent=1 // pred_fallthru
      _
    // Predicated region
    $region22: #{tpu_custom_call.1} parent=1 // pred_check
      _
    $region23: #{tpu_custom_call.1} parent=1 // pred_check_branch
      %64 = sbr.rel (0) target = $region25
    $region24: #{tpu_custom_call.1} parent=1 // pred_region
      _
    $region25: #{tpu_custom_call.1} parent=1 // pred_fallthru
      _
    // Predicated region
    $region26: #{tpu_custom_call.1} parent=1 // pred_check
      _
    $region27: #{tpu_custom_call.1} parent=1 // pred_check_branch
      %66 = sbr.rel (0) target = $region29
    $region28: #{tpu_custom_call.1} parent=1 // pred_region
      _
    $region29: #{tpu_custom_call.1} parent=1 // pred_fallthru
      _
    %67 = vsyncpa [#allocation6], 1

</llo_original>
